<compile_context>
chip_gen: v6e
topology: v6e:2x2x1
jax: 0.10.0
libtpu: 0.0.40
codegen_flags: <defaults>
</compile_context>

<pallas_src>
import functools

import jax
import jax.numpy as jnp
from jax.experimental import pallas as pl
from jax.experimental.pallas import tpu as pltpu

_LANE = 128
_SUBLANE = 8
_W_RESIDENT_BYTES = 2 * 1024 * 1024   # hold the whole weight in VMEM below this size


def _round_up(x: int, m: int) -> int:
    return ((x + m - 1) // m) * m


def _pick_tile_bytes() -> int:
    """Per-generation x-tile target (double-buffered: 2x this lives in VMEM)."""
    try:
        kind = jax.devices()[0].device_kind.lower()
    except Exception:  # pragma: no cover - defensive
        return 8 << 20
    if "v5 lite" in kind or "v5e" in kind or "v5litepod" in kind:
        return 4 << 20          # v5e: 4 MiB already amortizes per-step overhead
    if "v7" in kind:
        return 10 << 20         # v7x: 3.2 TB/s HBM, 64 MiB physical VMEM
    return 8 << 20              # v6e and anything unknown


def _choose_tiles(batch: int, n_in: int, itemsize: int, tile_bytes: int):
    """Pick (tb, tk): tb multiple of 8, tk multiple of 128, x tile ~ tile_bytes."""
    n_in_128 = _round_up(n_in, _LANE)
    b8 = _round_up(batch, _SUBLANE)

    # K tile: as wide as possible while leaving room for at least 8 batch rows.
    max_tk = max(_LANE, (tile_bytes // (_SUBLANE * itemsize)) // _LANE * _LANE)
    tk = min(n_in_128, max_tk)

    # Batch tile: fill the remaining budget, multiple of 8 (sublane constraint).
    max_tb = max(_SUBLANE, (tile_bytes // (tk * itemsize)) // _SUBLANE * _SUBLANE)
    tb = min(b8, max_tb)

    # Prefer >= 2 batch tiles (megacore / v7x 2 TCs) whenever the batch allows.
    if b8 >= 2 * _SUBLANE:
        tb = min(tb, max(_SUBLANE, _round_up((b8 + 1) // 2, _SUBLANE)))
    return tb, tk


def _logistic_kernel(x_ref, w_ref, b_ref, o_ref, *, tk, n_in, num_k, w_resident):
    # x_ref: (tb, tk) VMEM (activation dtype)
    # w_ref: (1, n_in_p) VMEM resident  OR  (1, tk) VMEM streamed, f32
    # b_ref: (1, 1) SMEM f32
    # o_ref: (tb, 1) VMEM f32 — resident across the K axis, doubles as accumulator
    k = pl.program_id(1)

    @pl.when(k == 0)
    def _init():
        o_ref[...] = jnp.zeros_like(o_ref)

    x = x_ref[...]
    if n_in % tk != 0:
        # Ragged last K tile: out-of-range x columns are unspecified memory; zero them.
        # (The matching weight columns are explicit zeros from the wrapper pad.)
        col = jax.lax.broadcasted_iota(jnp.int32, x.shape, 1) + k * tk
        x = jnp.where(col < n_in, x, jnp.zeros_like(x))

    if w_resident and num_k > 1:
        w = w_ref[:, pl.ds(pl.multiple_of(k * tk, _LANE), tk)]
    else:
        w = w_ref[...]
    w = w.astype(x.dtype)

    # (tb, tk) · (1, tk)^T -> (tb, 1), accumulated in f32 on the MXU.
    o_ref[...] += jax.lax.dot_general(
        x, w,
        dimension_numbers=(((1,), (1,)), ((), ())),
        preferred_element_type=jnp.float32,
    )

    @pl.when(k == pl.num_programs(1) - 1)
    def _finalize():
        o_ref[...] += b_ref[0, 0]


@jax.jit
def logistic_forward(x, weight, bias):
    """Equivalent of Logistic.forward.

    Args:
        x: (B, C, H, W) float32 or bfloat16
        weight: (1, n_in) torch.nn.Linear weight layout, n_in = C*H*W
        bias: (1,)
    Returns:
        y.T.squeeze(): shape (B,) logits (scalar if B == 1), float32.
    """
    B = x.shape[0]
    n_in = weight.shape[1]

    # Flatten(start_dim=1); keep bf16 streams in bf16 (kernel is HBM-bound).
    x_flat = x.reshape(B, n_in)
    if x_flat.dtype not in (jnp.dtype(jnp.bfloat16), jnp.dtype(jnp.float32)):
        x_flat = x_flat.astype(jnp.float32)
    x_itemsize = jnp.dtype(x_flat.dtype).itemsize

    tile_bytes = _pick_tile_bytes()
    tb, tk = _choose_tiles(B, n_in, x_itemsize, tile_bytes)
    nb = pl.cdiv(B, tb)
    nk = pl.cdiv(n_in, tk)
    n_in_p = nk * tk

    # Lane-dense weight row, f32, zero-padded along K (tiny copy; x is never padded).
    w_row = weight.reshape(1, n_in).astype(jnp.float32)
    if n_in_p != n_in:
        w_row = jnp.pad(w_row, ((0, 0), (0, n_in_p - n_in)))
    b_smem = bias.reshape(1, 1).astype(jnp.float32)

    w_resident = (n_in_p * 4) <= _W_RESIDENT_BYTES
    if w_resident:
        w_spec = pl.BlockSpec((1, n_in_p), lambda i, k: (0, 0))   # fetched once
        w_vmem_cols = n_in_p
    else:
        w_spec = pl.BlockSpec((1, tk), lambda i, k: (0, k))       # streamed per K tile
        w_vmem_cols = tk

    # Real (padded) VMEM footprint: x double-buffered (already (8,128)-aligned),
    # w (1, cols) padded to 8 sublanes, out (tb, 1) padded to 128 lanes; + headroom.
    vmem_est = (2 * tb * tk * x_itemsize
                + 2 * _SUBLANE * w_vmem_cols * 4
                + 2 * tb * _LANE * 4)
    vmem_limit = int(min(max(vmem_est + (4 << 20), 16 << 20), 48 << 20))

    kernel = functools.partial(_logistic_kernel, tk=tk, n_in=n_in,
                               num_k=nk, w_resident=w_resident)

    out = pl.pallas_call(
        kernel,
        out_shape=jax.ShapeDtypeStruct((B, 1), jnp.float32),
        grid_spec=pltpu.PrefetchScalarGridSpec(
            num_scalar_prefetch=0,
            grid=(nb, nk),
            in_specs=[
                pl.BlockSpec((tb, tk), lambda i, k: (i, k)),   # x: streamed, unpadded
                w_spec,                                        # w: lane-dense row
                pl.BlockSpec(memory_space=pltpu.SMEM),         # bias scalar
            ],
            out_specs=pl.BlockSpec((tb, 1), lambda i, k: (i, 0)),
        ),
        compiler_params=pltpu.CompilerParams(
            dimension_semantics=("parallel", "arbitrary"),
            vmem_limit_bytes=vmem_limit,
        ),
        cost_estimate=pl.CostEstimate(
            flops=2 * B * n_in,
            transcendentals=0,
            bytes_accessed=B * n_in * x_itemsize + n_in_p * 4 + B * 4,
        ),
    )(x_flat, w_row, b_smem)

    # y.T.squeeze(): (B,) for B > 1, scalar for B == 1 — matches torch semantics.
    return jnp.squeeze(out.T)


if __name__ == "__main__":
    # Small shapes consistent with a 4-D input: B=2, C=4, H=W=16 -> n_in = 1024.
    B, C, H, W = 2, 4, 16, 16
    n_in = C * H * W

    key = jax.random.PRNGKey(0)
    kx, kw, kb = jax.random.split(key, 3)

    x = jax.random.normal(kx, (B, C, H, W), dtype=jnp.float32)
    # torch.nn.Linear default init is U(-1/sqrt(n_in), 1/sqrt(n_in)).
    bound = 1.0 / (n_in ** 0.5)
    weight = jax.random.uniform(kw, (1, n_in), minval=-bound, maxval=bound,
                                dtype=jnp.float32)
    bias = jax.random.uniform(kb, (1,), minval=-bound, maxval=bound,
                              dtype=jnp.float32)

    y = logistic_forward(x, weight, bias)
    y = jax.block_until_ready(y)

    # Reference check in plain JAX.
    y_ref = jnp.squeeze((x.reshape(B, n_in) @ weight.reshape(n_in, 1) + bias).T)
    assert y.shape == (B,), y.shape
    assert jnp.allclose(y, y_ref, atol=1e-5, rtol=1e-5), (y, y_ref)

    print("KERNEL_OK")
</pallas_src>

<mosaic_0001>
module attributes {stable_mosaic.version = 11 : i64} {
  func.func @_logistic_kernel(%arg0: i32, %arg1: i32, %arg2: memref<8x1024xf32, #tpu.memory_space<vmem>>, %arg3: memref<1x1024xf32, #tpu.memory_space<vmem>>, %arg4: memref<1x1xf32, #tpu.memory_space<smem>>, %arg5: memref<8x1xf32, #tpu.memory_space<vmem>>) attributes {dimension_semantics = [#tpu.dimension_semantics<parallel>, #tpu.dimension_semantics<arbitrary>], iteration_bounds = array<i64: 1, 1>, scalar_prefetch = 0 : i64, scratch_operands = 0 : i64, tpu.core_type = #tpu.core_type<tc>, window_params = [{transform_indices = @transform_0, window_bounds = array<i64: 8, 1024>}, {pipeline_mode = #tpu.pipeline_mode<synchronous>, transform_indices = @transform_1, window_bounds = array<i64: 1, 1024>}, {transform_indices = @transform_2, window_bounds = array<i64: 1, 1>}, {transform_indices = @transform_3, window_bounds = array<i64: 8, 1>}]} {
    %c0_i32 = arith.constant 0 : i32
    %0 = arith.cmpi eq, %arg1, %c0_i32 : i32
    %1 = arith.extui %0 : i1 to i32
    %c0_i32_0 = arith.constant 0 : i32
    %2 = arith.cmpi ne, %1, %c0_i32_0 : i32
    scf.if %2 {
      %cst_10 = arith.constant 0.000000e+00 : f32
      %12 = vector.broadcast %cst_10 : f32 to vector<8x1xf32>
      %c0_11 = arith.constant 0 : index
      %c0_12 = arith.constant 0 : index
      %13 = vector.load %arg5[%c0_11, %c0_12] : memref<8x1xf32, #tpu.memory_space<vmem>>, vector<8x1xf32>
      tpu.vector_store %arg5[%c0_11, %c0_12], %12 {strides = array<i32>} : memref<8x1xf32, #tpu.memory_space<vmem>>, vector<8x1xf32>,
    } else {
    }
    %c0 = arith.constant 0 : index
    %c0_1 = arith.constant 0 : index
    %3 = vector.load %arg2[%c0, %c0_1] : memref<8x1024xf32, #tpu.memory_space<vmem>>, vector<8x1024xf32>
    %c0_2 = arith.constant 0 : index
    %c0_3 = arith.constant 0 : index
    %4 = vector.load %arg3[%c0_2, %c0_3] : memref<1x1024xf32, #tpu.memory_space<vmem>>, vector<1x1024xf32>
    %c0_4 = arith.constant 0 : index
    %c0_5 = arith.constant 0 : index
    %5 = vector.load %arg5[%c0_4, %c0_5] : memref<8x1xf32, #tpu.memory_space<vmem>>, vector<8x1xf32>
    %cst = arith.constant dense<0.000000e+00> : vector<8x1xf32>
    %6 = tpu.matmul %3, %4, %cst {dimension_numbers = #tpu.dot_dimension_numbers<[1], [1], [0], [0], [0, 0, 1, 0], [], []>} : vector<8x1024xf32>, vector<1x1024xf32>, vector<8x1xf32> -> vector<8x1xf32>
    %7 = arith.addf %5, %6 : vector<8x1xf32>
    %c0_6 = arith.constant 0 : index
    %c0_7 = arith.constant 0 : index
    %8 = vector.load %arg5[%c0_6, %c0_7] : memref<8x1xf32, #tpu.memory_space<vmem>>, vector<8x1xf32>
    tpu.vector_store %arg5[%c0_6, %c0_7], %7 {strides = array<i32>} : memref<8x1xf32, #tpu.memory_space<vmem>>, vector<8x1xf32>,
    %c0_i32_8 = arith.constant 0 : i32
    %9 = arith.cmpi eq, %arg1, %c0_i32_8 : i32
    %10 = arith.extui %9 : i1 to i32
    %c0_i32_9 = arith.constant 0 : i32
    %11 = arith.cmpi ne, %10, %c0_i32_9 : i32
    scf.if %11 {
      %c0_10 = arith.constant 0 : index
      %c0_11 = arith.constant 0 : index
      %12 = vector.load %arg5[%c0_10, %c0_11] : memref<8x1xf32, #tpu.memory_space<vmem>>, vector<8x1xf32>
      %c0_12 = arith.constant 0 : index
      %c0_13 = arith.constant 0 : index
      %13 = memref.load %arg4[%c0_12, %c0_13] : memref<1x1xf32, #tpu.memory_space<smem>>
      %14 = vector.broadcast %13 : f32 to vector<8x1xf32>
      %15 = arith.addf %12, %14 : vector<8x1xf32>
      %c0_14 = arith.constant 0 : index
      %c0_15 = arith.constant 0 : index
      %16 = vector.load %arg5[%c0_14, %c0_15] : memref<8x1xf32, #tpu.memory_space<vmem>>, vector<8x1xf32>
      tpu.vector_store %arg5[%c0_14, %c0_15], %15 {strides = array<i32>} : memref<8x1xf32, #tpu.memory_space<vmem>>, vector<8x1xf32>,
    } else {
    }
    return
  }
  func.func @transform_0(%arg0: i32, %arg1: i32) -> (i32, i32) {
    %c0_i32 = arith.constant 0 : i32
    return %arg0, %arg1 : i32, i32
  }
  func.func @transform_1(%arg0: i32, %arg1: i32) -> (i32, i32) {
    %c0_i32 = arith.constant 0 : i32
    %c0_i32_0 = arith.constant 0 : i32
    %c0_i32_1 = arith.constant 0 : i32
    return %c0_i32, %c0_i32_0 : i32, i32
  }
  func.func @transform_2(%arg0: i32, %arg1: i32) -> (i32, i32) {
    %c0_i32 = arith.constant 0 : i32
    %c0_i32_0 = arith.constant 0 : i32
    %c0_i32_1 = arith.constant 0 : i32
    return %c0_i32, %c0_i32_0 : i32, i32
  }
  func.func @transform_3(%arg0: i32, %arg1: i32) -> (i32, i32) {
    %c0_i32 = arith.constant 0 : i32
    %c0_i32_0 = arith.constant 0 : i32
    return %arg0, %c0_i32 : i32, i32
  }
}

</mosaic_0001>

<llo_original>
// kernel: logistic_forward.1
$region0: #{logistic_forward.1}
  #allocation0 [shape = 'u32[]', space=smem, size = 0x4, offset = 0x4, fixed_abs, tag = 'smem constant byte address 0x4 - core index']
  #allocation1 [shape = 'u32[144,128]{1,0:T(1,128)}', space=vmem, size = 0x12000, scoped, tag = 'internal scratch']
  #allocation2 [shape = 'f32[1,1]{1,0:T(1,128)S(6)}', space=smem, size = 0x200, scoped, tag = 'scoped memory for logistic_forward.1']
  %s0 = inlined_call_operand.vmem [shape: f32[2,1024], index: 0, kind: input, shape index: {}]
  %s1 = inlined_call_operand.vmem [shape: f32[1,1024], index: 1, kind: input, shape index: {}]
  %s2 = inlined_call_operand.<no memory space> [shape: f32[1,1], index: 2, kind: input, shape index: {}]
  %s3 = inlined_call_operand.vmem [shape: f32[2,1], index: 3, kind: output, shape index: {}]
  %s4 = sld [smem:[#allocation0]]
  $region60: #{logistic_forward.1} parent=0
    _
  %s6 = ssub.s32 1, %s4
  %s7 = scalar_select 0, %s6, %s4
  %8 = sst [smem:[#allocation2]] %s2
  $region1: #{logistic_forward.1} parent=0
    #allocation3 [shape = 'u8[4096]{0}', space=vmem, size = 0x1000, scoped, tag = 'output window, operand 0, single buffered']
    // Predicated region
    $region2: #{logistic_forward.1} parent=1 // pred_check
      _
    $region3: #{logistic_forward.1} parent=1 // pred_check_branch
      %10 = sbr.rel (0) target = $region5
    $region4: #{logistic_forward.1} parent=1 // pred_region
      _
    $region5: #{logistic_forward.1} parent=1 // pred_fallthru
      _
    // Predicated region
    $region6: #{logistic_forward.1} parent=1 // pred_check
      _
    $region7: #{logistic_forward.1} parent=1 // pred_check_branch
      %12 = sbr.rel (0) target = $region9
    $region8: #{logistic_forward.1} parent=1 // pred_region
      _
    $region9: #{logistic_forward.1} parent=1 // pred_fallthru
      _
    // Predicated region
    $region10: #{logistic_forward.1} parent=1 // pred_check
      _
    $region11: #{logistic_forward.1} parent=1 // pred_check_branch
      %14 = sbr.rel (0) target = $region13
    $region12: #{logistic_forward.1} parent=1 // pred_region
      _
    $region13: #{logistic_forward.1} parent=1 // pred_fallthru
      _
    %p15 = scmp.eq.s32.totalorder 0, 0
    // Predicated region
    $region14: #{logistic_forward.1} parent=1 // pred_check
      %p16 = pneg %p15
    $region15: #{logistic_forward.1} parent=1 // pred_check_branch
      %18 = sbr.rel (%p16) target = $region17
    $region16: #{logistic_forward.1} parent=1 // pred_region
      %vm19 = vcmask 7168
      %20 = vst.msk [vmem:[#allocation3] sm:$0xff] %vm19, 0.0
    $region17: #{logistic_forward.1} parent=1 // pred_fallthru
      _
    %v21 = vld [vmem:[%s0] sm:$0xff]
    %v22 = vld [vmem:[%s0 + $0x8] sm:$0xff]
    %v23 = vld [vmem:[%s0 + $0x10] sm:$0xff]
    %v24 = vld [vmem:[%s0 + $0x18] sm:$0xff]
    %v25 = vld [vmem:[%s0 + $0x20] sm:$0xff]
    %v26 = vld [vmem:[%s0 + $0x28] sm:$0xff]
    %v27 = vld [vmem:[%s0 + $0x30] sm:$0xff]
    %v28 = vld [vmem:[%s0 + $0x38] sm:$0xff]
    %v29 = vld [vmem:[%s1] sm:$0xff]
    %v30 = vld [vmem:[#allocation3] sm:$0xff]
    %v32 = vlaneseq
    %v33 = vshrl.u32 %v32, 7
    %v34 = vsub.s32 0, %v33
    %v35 = vrot.slane %v29, %v34
    %v36 = vlaneseq
    %v37 = vshrl.u32 %v36, 7
    %v38 = vsub.s32 1, %v37
    %v39 = vrot.slane %v29, %v38
    %v40 = vlaneseq
    %v41 = vshrl.u32 %v40, 7
    %v42 = vsub.s32 2, %v41
    %v43 = vrot.slane %v29, %v42
    %v44 = vlaneseq
    %v45 = vshrl.u32 %v44, 7
    %v46 = vsub.s32 3, %v45
    %v47 = vrot.slane %v29, %v46
    %v48 = vlaneseq
    %v49 = vshrl.u32 %v48, 7
    %v50 = vsub.s32 4, %v49
    %v51 = vrot.slane %v29, %v50
    %v52 = vlaneseq
    %v53 = vshrl.u32 %v52, 7
    %v54 = vsub.s32 5, %v53
    %v55 = vrot.slane %v29, %v54
    %v56 = vlaneseq
    %v57 = vshrl.u32 %v56, 7
    %v58 = vsub.s32 6, %v57
    %v59 = vrot.slane %v29, %v58
    %v60 = vlaneseq
    %v61 = vshrl.u32 %v60, 7
    %v62 = vsub.s32 7, %v61
    %v63 = vrot.slane %v29, %v62
    %v64 = vcombine.low %v35, %v39
    %v65 = vcombine.high %v35, %v39
    %v66 = vcombine.low %v43, %v47
    %v67 = vcombine.high %v43, %v47
    %v69 = vunpack.c.l.s4 1983009808
    %v70 = vunpack.c.0.s8 %v69
    %v71 = vlaneseq
    %v72 = vshrl.u32 %v71, 7
    %v73 = vsub.s32 %v70, %v72
    %v74 = vrot.slane %v64, %v73
    %v76 = vunpack.c.l.s4 1983009808
    %v77 = vunpack.c.0.s8 %v76
    %v78 = vlaneseq
    %v79 = vshrl.u32 %v78, 7
    %v80 = vsub.s32 %v77, %v79
    %v81 = vrot.slane %v65, %v80
    %v83 = vunpack.c.l.s4 1983009808
    %v84 = vunpack.c.0.s8 %v83
    %v85 = vlaneseq
    %v86 = vshrl.u32 %v85, 7
    %v87 = vsub.s32 %v84, %v86
    %v88 = vrot.slane %v66, %v87
    %v90 = vunpack.c.l.s4 1983009808
    %v91 = vunpack.c.0.s8 %v90
    %v92 = vlaneseq
    %v93 = vshrl.u32 %v92, 7
    %v94 = vsub.s32 %v91, %v93
    %v95 = vrot.slane %v67, %v94
    %v96 = vcombine.low %v74, %v88
    %v97 = vcombine.high %v74, %v88
    %v98 = vcombine.low %v81, %v95
    %v99 = vcombine.high %v81, %v95
    %v100 = vcombine.low %v51, %v55
    %v101 = vcombine.high %v51, %v55
    %v102 = vcombine.low %v59, %v63
    %v103 = vcombine.high %v59, %v63
    %v105 = vunpack.c.l.s4 1983009808
    %v106 = vunpack.c.0.s8 %v105
    %v107 = vlaneseq
    %v108 = vshrl.u32 %v107, 7
    %v109 = vsub.s32 %v106, %v108
    %v110 = vrot.slane %v100, %v109
    %v112 = vunpack.c.l.s4 1983009808
    %v113 = vunpack.c.0.s8 %v112
    %v114 = vlaneseq
    %v115 = vshrl.u32 %v114, 7
    %v116 = vsub.s32 %v113, %v115
    %v117 = vrot.slane %v101, %v116
    %v119 = vunpack.c.l.s4 1983009808
    %v120 = vunpack.c.0.s8 %v119
    %v121 = vlaneseq
    %v122 = vshrl.u32 %v121, 7
    %v123 = vsub.s32 %v120, %v122
    %v124 = vrot.slane %v102, %v123
    %v126 = vunpack.c.l.s4 1983009808
    %v127 = vunpack.c.0.s8 %v126
    %v128 = vlaneseq
    %v129 = vshrl.u32 %v128, 7
    %v130 = vsub.s32 %v127, %v129
    %v131 = vrot.slane %v103, %v130
    %v132 = vcombine.low %v110, %v124
    %v133 = vcombine.high %v110, %v124
    %v134 = vcombine.low %v117, %v131
    %v135 = vcombine.high %v117, %v131
    %v144 = vmul.f32 %v21, %v96
    %v145 = vmul.f32 %v22, %v132
    %v146 = vmul.f32 %v23, %v97
    %v147 = vmul.f32 %v24, %v133
    %v148 = vmul.f32 %v25, %v98
    %v149 = vmul.f32 %v26, %v134
    %v150 = vmul.f32 %v27, %v99
    %v151 = vmul.f32 %v28, %v135
    %v160 = vcombine.low %v144, %v146
    %v161 = vcombine.high %v144, %v146
    %v162 = vcombine.low %v148, %v150
    %v163 = vcombine.high %v148, %v150
    %v165 = vunpack.c.l.s4 1983009808
    %v166 = vunpack.c.0.s8 %v165
    %v167 = vlaneseq
    %v168 = vshrl.u32 %v167, 7
    %v169 = vsub.s32 %v166, %v168
    %v170 = vrot.slane %v160, %v169
    %v172 = vunpack.c.l.s4 1983009808
    %v173 = vunpack.c.0.s8 %v172
    %v174 = vlaneseq
    %v175 = vshrl.u32 %v174, 7
    %v176 = vsub.s32 %v173, %v175
    %v177 = vrot.slane %v161, %v176
    %v179 = vunpack.c.l.s4 1983009808
    %v180 = vunpack.c.0.s8 %v179
    %v181 = vlaneseq
    %v182 = vshrl.u32 %v181, 7
    %v183 = vsub.s32 %v180, %v182
    %v184 = vrot.slane %v162, %v183
    %v186 = vunpack.c.l.s4 1983009808
    %v187 = vunpack.c.0.s8 %v186
    %v188 = vlaneseq
    %v189 = vshrl.u32 %v188, 7
    %v190 = vsub.s32 %v187, %v189
    %v191 = vrot.slane %v163, %v190
    %v192 = vcombine.low %v170, %v184
    %v193 = vcombine.high %v170, %v184
    %v194 = vcombine.low %v177, %v191
    %v195 = vcombine.high %v177, %v191
    %v196 = vcombine.low %v145, %v147
    %v197 = vcombine.high %v145, %v147
    %v198 = vcombine.low %v149, %v151
    %v199 = vcombine.high %v149, %v151
    %v201 = vunpack.c.l.s4 1983009808
    %v202 = vunpack.c.0.s8 %v201
    %v203 = vlaneseq
    %v204 = vshrl.u32 %v203, 7
    %v205 = vsub.s32 %v202, %v204
    %v206 = vrot.slane %v196, %v205
    %v208 = vunpack.c.l.s4 1983009808
    %v209 = vunpack.c.0.s8 %v208
    %v210 = vlaneseq
    %v211 = vshrl.u32 %v210, 7
    %v212 = vsub.s32 %v209, %v211
    %v213 = vrot.slane %v197, %v212
    %v215 = vunpack.c.l.s4 1983009808
    %v216 = vunpack.c.0.s8 %v215
    %v217 = vlaneseq
    %v218 = vshrl.u32 %v217, 7
    %v219 = vsub.s32 %v216, %v218
    %v220 = vrot.slane %v198, %v219
    %v222 = vunpack.c.l.s4 1983009808
    %v223 = vunpack.c.0.s8 %v222
    %v224 = vlaneseq
    %v225 = vshrl.u32 %v224, 7
    %v226 = vsub.s32 %v223, %v225
    %v227 = vrot.slane %v199, %v226
    %v228 = vcombine.low %v206, %v220
    %v229 = vcombine.high %v206, %v220
    %v230 = vcombine.low %v213, %v227
    %v231 = vcombine.high %v213, %v227
    %v240 = vadd.f32 %v192, %v193
    %v241 = vadd.f32 %v240, %v194
    %v242 = vadd.f32 %v241, %v195
    %v243 = vadd.f32 %v242, %v228
    %v244 = vadd.f32 %v243, %v229
    %v245 = vadd.f32 %v244, %v230
    %v246 = vadd.f32 %v245, %v231
    %247 = vadd.xlane.f32.xlu0 %v246
    %v248 = vpop.xlane.xlu0 %247
    %v249 = vadd.f32 %v30, %v248
    %vm250 = vcmask 7168
    %251 = vst.msk [vmem:[#allocation3] sm:$0xff] %vm250, %v249
    // Predicated region
    $region18: #{logistic_forward.1} parent=1 // pred_check
      %p252 = pneg %p15
    $region19: #{logistic_forward.1} parent=1 // pred_check_branch
      %254 = sbr.rel (%p252) target = $region21
    $region20: #{logistic_forward.1} parent=1 // pred_region
      %v255 = vld [vmem:[#allocation3] sm:$0xff]
      %s256 = sld [smem:[#allocation2]]
      %v257 = vstv %s256
      %v258 = vadd.f32 %v255, %v257
      %259 = vst.msk [vmem:[#allocation3] sm:$0xff] %vm250, %v258
    $region21: #{logistic_forward.1} parent=1 // pred_fallthru
      _
    // Predicated region
    $region22: #{logistic_forward.1} parent=1 // pred_check
      _
    $region23: #{logistic_forward.1} parent=1 // pred_check_branch
      %261 = sbr.rel (0) target = $region25
    $region24: #{logistic_forward.1} parent=1 // pred_region
      // Predicated region
      $region26: #{logistic_forward.1} parent=24 // pred_check
        _
      $region27: #{logistic_forward.1} parent=24 // pred_check_branch
        %263 = sbr.rel (0) target = $region29
      $region28: #{logistic_forward.1} parent=24 // pred_region
        // Predicated region
        $region30: #{logistic_forward.1} parent=28 // pred_check
          _
        $region31: #{logistic_forward.1} parent=28 // pred_check_branch
          %265 = sbr.rel target = $region33
        $region32: #{logistic_forward.1} parent=28 // pred_region
          // Predicated region
          $region45: #{logistic_forward.1} parent=32 // pred_check
            _
          $region46: #{logistic_forward.1} parent=32 // pred_check_branch
            %281 = sbr.rel (0) target = $region48
          $region47: #{logistic_forward.1} parent=32 // pred_region
            %s283 = ssub.s32 4, 1
            loop: start=0, step=1, limit=1
            $region49: #{logistic_forward.1} parent=47 // loop_pre_header
              _
            $region50: #{logistic_forward.1} parent=47 // loop_header
              %s285 = sphi 0, %s289
              %p286 = scmp.ge.s32.totalorder %s285, 1
              %s290 = sphi [#allocation3], [#allocation3]
              %s291 = sphi %s3, %s3
            $region51: #{logistic_forward.1} parent=47 // loop_header_branch
              %288 = sbr.rel (%p286) target = $region55
            $region52: #{logistic_forward.1} parent=47 // loop_body
              %v292 = vld [vmem:[%s290] sm:%s283]
              %293 = vst [vmem:[%s291] sm:%s283] %v292
            $region53: #{logistic_forward.1} parent=47 // loop_footer
              %s289 = sadd.s32 1, %s285
            $region54: #{logistic_forward.1} parent=47 // loop_footer_branch
              %284 = sbr.rel target = $region50
            $region55: #{logistic_forward.1} parent=47 // loop_exit
              _
          $region48: #{logistic_forward.1} parent=32 // pred_fallthru
            _
        $region33: #{logistic_forward.1} parent=28 // pred_fallthru
          _
        // Predicated region
        $region34: #{logistic_forward.1} parent=28 // pred_check
          _
        $region35: #{logistic_forward.1} parent=28 // pred_check_branch
          %267 = sbr.rel (0) target = $region37
        $region36: #{logistic_forward.1} parent=28 // pred_region
          %s269 = ssub.s32 4, 1
          loop: start=0, step=1, limit=1
          $region38: #{logistic_forward.1} parent=36 // loop_pre_header
            _
          $region39: #{logistic_forward.1} parent=36 // loop_header
            %s271 = sphi 0, %s275
            %p272 = scmp.ge.s32.totalorder %s271, 1
            %s276 = sphi [#allocation3], [#allocation3]
            %s277 = sphi %s3, %s3
          $region40: #{logistic_forward.1} parent=36 // loop_header_branch
            %274 = sbr.rel (%p272) target = $region44
          $region41: #{logistic_forward.1} parent=36 // loop_body
            %v278 = vld [vmem:[%s276] sm:%s269]
            %279 = vst [vmem:[%s277] sm:%s269] %v278
          $region42: #{logistic_forward.1} parent=36 // loop_footer
            %s275 = sadd.s32 1, %s271
          $region43: #{logistic_forward.1} parent=36 // loop_footer_branch
            %270 = sbr.rel target = $region39
          $region44: #{logistic_forward.1} parent=36 // loop_exit
            _
        $region37: #{logistic_forward.1} parent=28 // pred_fallthru
          _
      $region29: #{logistic_forward.1} parent=24 // pred_fallthru
        _
      %294 = vnop
    $region25: #{logistic_forward.1} parent=1 // pred_fallthru
      _
    // Predicated region
    $region56: #{logistic_forward.1} parent=1 // pred_check
      _
    $region57: #{logistic_forward.1} parent=1 // pred_check_branch
      %296 = sbr.rel (0) target = $region59
    $region58: #{logistic_forward.1} parent=1 // pred_region
      _
    $region59: #{logistic_forward.1} parent=1 // pred_fallthru
      _

</llo_original>
